<compile_context>
chip_gen: v5e
topology: v5e:2x2
jax: 0.10.0
libtpu: 0.0.40
codegen_flags: <defaults>
</compile_context>

<pallas_src>
import functools

import jax
import jax.numpy as jnp
from jax.experimental import pallas as pl
from jax.experimental.pallas import tpu as pltpu

GAMMA = 2.0  # module default


def _cdiv(a: int, b: int) -> int:
    return -(-a // b)


def _round_up(x: int, m: int) -> int:
    return (x + m - 1) // m * m


def _focal_modulation(one_minus_p, log_p, gamma):
    """(1 - p)^gamma * log p, with small-integer gamma as cheap VPU multiplies."""
    if float(gamma) == int(gamma) and 0 <= int(gamma) <= 4:
        w = jnp.ones_like(log_p)
        for _ in range(int(gamma)):
            w = w * one_minus_p                  # VPU muls, no EUP log/exp
        return w * log_p
    return jnp.power(one_minus_p, gamma) * log_p  # non-integer gamma fallback


def _focal_loss_kernel(x_ref, t_ref, out_ref, *, gamma, n_rows, block_rows):
    # Native-dtype tile DMA'd by BlockSpec; do the math in f32 on the VPU.
    x = x_ref[...].astype(jnp.float32)           # (TN, C) logits
    t = t_ref[...]                               # (TN, 1) int32 targets

    # Numerically-stable logsumexp over the class (lane) axis: ONE exp pass.
    m = jnp.max(x, axis=-1, keepdims=True)                                # (TN, 1)
    shifted = x - m                                                       # (TN, C)
    lse = jnp.log(jnp.sum(jnp.exp(shifted), axis=-1, keepdims=True))      # (TN, 1)

    # Gather the target-class shifted logit via a one-hot mask (no dyn gather).
    class_ids = jax.lax.broadcasted_iota(jnp.int32, x.shape, 1)           # (TN, C)
    picked_shifted = jnp.sum(jnp.where(class_ids == t, shifted, 0.0),
                             axis=-1, keepdims=True)                      # (TN, 1)

    # Focal math on just the TN gathered values.
    log_p = picked_shifted - lse                                          # (TN, 1)
    p = jnp.exp(log_p)
    one_minus_p = jnp.maximum(1.0 - p, 0.0)      # clamp: avoids NaN in power path
    focal = _focal_modulation(one_minus_p, log_p, gamma)                  # (TN, 1)

    # Mask rows past the true N (ragged final tile -> garbage rows must not
    # contribute to the partial sum; per-row reductions keep them isolated).
    row0 = pl.program_id(0) * block_rows
    row_ids = row0 + jax.lax.broadcasted_iota(jnp.int32, focal.shape, 0)
    focal = jnp.where(row_ids < n_rows, focal, 0.0)

    # Per-tile partial sum -> one SMEM scalar per grid step.
    out_ref[0, 0] = jnp.sum(focal)


def focal_loss(logits: jax.Array, targets: jax.Array,
               *, gamma: float = GAMMA) -> jax.Array:
    """logits: (N, C) float (f32/bf16/fp16), targets: (N,) int in [0, C).

    Returns scalar f32 loss, matching
    FocalLoss(weight=None, gamma=gamma, reduction='mean').forward.
    """
    # TODO(synk): F.nll_loss's default ignore_index=-100 and per-class weights
    # are not handled; targets are assumed to be valid class indices in [0, C).
    n, c = logits.shape
    elem = jnp.dtype(logits.dtype).itemsize
    sub = 8 if elem >= 4 else (16 if elem == 2 else 32)   # sublane packing per dtype

    # Per-generation VMEM budget (v5e/v6e: 128 MiB, v7x: 64 MiB).
    try:
        vmem_bytes = int(pltpu.get_tpu_info().vmem_capacity_bytes)
    except Exception:
        vmem_bytes = 64 * 1024 * 1024            # conservative (v7x-sized) fallback
    per_buf_budget = vmem_bytes // 8             # ~2 live logits buffers + headroom
    vmem_limit = min(vmem_bytes // 2, 96 * 1024 * 1024)

    # C-aware row tile: as many sublane-aligned rows as the budget allows.
    tn = max(sub, per_buf_budget // (c * elem) // sub * sub)
    if tn >= n:
        tn = n                                   # single full-height block
        if n >= 2 * sub:                         # keep >=2 row tiles for v7x megacore
            tn = _round_up(_cdiv(n, 2), sub)
    num_tiles = _cdiv(n, tn)
    # TODO(synk): for extreme C where even sub*C*elem exceeds the VMEM budget, a
    # class-tiled online-logsumexp path (2nd grid axis) would be needed.

    t2d = targets.astype(jnp.int32).reshape(n, 1)

    partials = pl.pallas_call(
        functools.partial(_focal_loss_kernel, gamma=gamma, n_rows=n, block_rows=tn),
        out_shape=jax.ShapeDtypeStruct((num_tiles, 1), jnp.float32),
        grid=(num_tiles,),
        in_specs=[
            pl.BlockSpec((tn, c), lambda i: (i, 0)),   # logits tile, native dtype
            pl.BlockSpec((tn, 1), lambda i: (i, 0)),   # targets tile
        ],
        out_specs=pl.BlockSpec((1, 1), lambda i: (i, 0),
                               memory_space=pltpu.MemorySpace.SMEM),
        compiler_params=pltpu.CompilerParams(
            dimension_semantics=("parallel",),    # rows split across TCs on v7x
            vmem_limit_bytes=vmem_limit,
        ),
    )(logits, t2d)

    # reduction='mean', weight=None: -sum(per-row focal) / N (pads already masked).
    return -jnp.sum(partials) / jnp.float32(n)


def _focal_loss_ref(logits, targets, gamma=GAMMA):
    log_prob = jax.nn.log_softmax(logits.astype(jnp.float32), axis=-1)
    prob = jnp.exp(log_prob)
    mod = jnp.power(1.0 - prob, gamma) * log_prob
    picked = jnp.take_along_axis(mod, targets[:, None].astype(jnp.int32), axis=-1)[:, 0]
    return -jnp.mean(picked)


if __name__ == "__main__":
    key = jax.random.PRNGKey(0)
    kx, kt = jax.random.split(key)
    N, C = 8, 32
    logits = jax.random.normal(kx, (N, C), dtype=jnp.float32)
    targets = jax.random.randint(kt, (N,), 0, C, dtype=jnp.int32)

    loss = focal_loss(logits, targets)
    jax.block_until_ready(loss)
    ref = _focal_loss_ref(logits, targets)
    assert jnp.allclose(loss, ref, rtol=1e-5, atol=1e-5), (loss, ref)

    # Multi-tile + ragged final tile (N not a multiple of the row tile), f32.
    kx2, kt2 = jax.random.split(jax.random.PRNGKey(1))
    N2, C2 = 24, 40
    logits2 = jax.random.normal(kx2, (N2, C2), dtype=jnp.float32)
    targets2 = jax.random.randint(kt2, (N2,), 0, C2, dtype=jnp.int32)
    loss2 = focal_loss(logits2, targets2)
    jax.block_until_ready(loss2)
    assert jnp.allclose(loss2, _focal_loss_ref(logits2, targets2), rtol=1e-5, atol=1e-5)

    # Native bf16 DMA path (cast to f32 inside the kernel), ragged tiles.
    kx3, kt3 = jax.random.split(jax.random.PRNGKey(2))
    N3, C3 = 50, 64
    logits3 = jax.random.normal(kx3, (N3, C3), dtype=jnp.float32).astype(jnp.bfloat16)
    targets3 = jax.random.randint(kt3, (N3,), 0, C3, dtype=jnp.int32)
    loss3 = focal_loss(logits3, targets3)
    jax.block_until_ready(loss3)
    assert jnp.allclose(loss3, _focal_loss_ref(logits3, targets3),
                        rtol=1e-4, atol=1e-4), (loss3, _focal_loss_ref(logits3, targets3))

    print("KERNEL_OK")
</pallas_src>

<mosaic_0001>
module attributes {stable_mosaic.version = 11 : i64} {
  func.func @_focal_loss_kernel(%arg0: i32, %arg1: memref<8x32xf32, #tpu.memory_space<vmem>>, %arg2: memref<8x1xi32, #tpu.memory_space<vmem>>, %arg3: memref<1x1xf32, #tpu.memory_space<smem>>) attributes {dimension_semantics = [#tpu.dimension_semantics<parallel>], iteration_bounds = array<i64: 1>, scalar_prefetch = 0 : i64, scratch_operands = 0 : i64, tpu.core_type = #tpu.core_type<tc>, window_params = [{transform_indices = @transform_0, window_bounds = array<i64: 8, 32>}, {transform_indices = @transform_1, window_bounds = array<i64: 8, 1>}, {transform_indices = @transform_2, window_bounds = array<i64: 1, 1>}]} {
    %c0 = arith.constant 0 : index
    %c0_0 = arith.constant 0 : index
    %0 = vector.load %arg1[%c0, %c0_0] : memref<8x32xf32, #tpu.memory_space<vmem>>, vector<8x32xf32>
    %c0_1 = arith.constant 0 : index
    %c0_2 = arith.constant 0 : index
    %1 = vector.load %arg2[%c0_1, %c0_2] : memref<8x1xi32, #tpu.memory_space<vmem>>, vector<8x1xi32>
    %cst = arith.constant dense<0xFF800000> : vector<8xf32>
    %2 = vector.multi_reduction <maximumf>, %0, %cst [1] : vector<8x32xf32> to vector<8xf32>
    %3 = vector.shape_cast %2 : vector<8xf32> to vector<8x1xf32>
    %4 = vector.broadcast %3 : vector<8x1xf32> to vector<8x32xf32>
    %5 = arith.subf %0, %4 : vector<8x32xf32>
    %6 = math.exp %5 : vector<8x32xf32>
    %cst_3 = arith.constant dense<0.000000e+00> : vector<8xf32>
    %7 = vector.multi_reduction <add>, %6, %cst_3 [1] : vector<8x32xf32> to vector<8xf32>
    %8 = vector.shape_cast %7 : vector<8xf32> to vector<8x1xf32>
    %9 = math.log %8 : vector<8x1xf32>
    %10 = tpu.iota {dimensions = array<i32: 1>} : vector<8x32xi32>
    %11 = vector.broadcast %1 : vector<8x1xi32> to vector<8x32xi32>
    %12 = arith.cmpi eq, %10, %11 : vector<8x32xi32>
    %cst_4 = arith.constant 0.000000e+00 : f32
    %13 = vector.broadcast %cst_4 : f32 to vector<8x32xf32>
    %14 = arith.select %12, %5, %13 : vector<8x32xi1>, vector<8x32xf32>
    %cst_5 = arith.constant dense<0.000000e+00> : vector<8xf32>
    %15 = vector.multi_reduction <add>, %14, %cst_5 [1] : vector<8x32xf32> to vector<8xf32>
    %16 = vector.shape_cast %15 : vector<8xf32> to vector<8x1xf32>
    %17 = arith.subf %16, %9 : vector<8x1xf32>
    %18 = math.exp %17 : vector<8x1xf32>
    %cst_6 = arith.constant 1.000000e+00 : f32
    %19 = vector.broadcast %cst_6 : f32 to vector<8x1xf32>
    %20 = arith.subf %19, %18 : vector<8x1xf32>
    %cst_7 = arith.constant 0.000000e+00 : f32
    %21 = vector.broadcast %cst_7 : f32 to vector<8x1xf32>
    %22 = arith.maximumf %20, %21 : vector<8x1xf32>
    %cst_8 = arith.constant 1.000000e+00 : f32
    %23 = vector.broadcast %cst_8 : f32 to vector<8x1xf32>
    %24 = arith.mulf %23, %22 : vector<8x1xf32>
    %25 = arith.mulf %24, %22 : vector<8x1xf32>
    %26 = arith.mulf %25, %17 : vector<8x1xf32>
    %c8_i32 = arith.constant 8 : i32
    %27 = arith.muli %arg0, %c8_i32 : i32
    %28 = tpu.iota {dimensions = array<i32: 0>} : vector<8x1xi32>
    %29 = vector.broadcast %27 : i32 to vector<8x1xi32>
    %30 = arith.addi %29, %28 : vector<8x1xi32>
    %c8_i32_9 = arith.constant 8 : i32
    %31 = vector.broadcast %c8_i32_9 : i32 to vector<8x1xi32>
    %32 = arith.cmpi slt, %30, %31 : vector<8x1xi32>
    %cst_10 = arith.constant 0.000000e+00 : f32
    %33 = vector.broadcast %cst_10 : f32 to vector<8x1xf32>
    %34 = arith.select %32, %26, %33 : vector<8x1xi1>, vector<8x1xf32>
    %35 = vector.shape_cast %34 : vector<8x1xf32> to vector<1x8x1xf32>
    %cst_11 = arith.constant dense<0.000000e+00> : vector<1xf32>
    %36 = vector.multi_reduction <add>, %35, %cst_11 [1, 2] : vector<1x8x1xf32> to vector<1xf32>
    %37 = vector.shape_cast %36 : vector<1xf32> to vector<1x1x1xf32>
    %38 = vector.extract %37[0, 0, 0] : f32 from vector<1x1x1xf32>
    %c0_12 = arith.constant 0 : index
    %c0_13 = arith.constant 0 : index
    %39 = memref.load %arg3[%c0_12, %c0_13] : memref<1x1xf32, #tpu.memory_space<smem>>
    memref.store %38, %arg3[%c0_12, %c0_13] : memref<1x1xf32, #tpu.memory_space<smem>>
    return
  }
  func.func @transform_0(%arg0: i32) -> (i32, i32) {
    %c0_i32 = arith.constant 0 : i32
    %c0_i32_0 = arith.constant 0 : i32
    return %arg0, %c0_i32 : i32, i32
  }
  func.func @transform_1(%arg0: i32) -> (i32, i32) {
    %c0_i32 = arith.constant 0 : i32
    %c0_i32_0 = arith.constant 0 : i32
    return %arg0, %c0_i32 : i32, i32
  }
  func.func @transform_2(%arg0: i32) -> (i32, i32) {
    %c0_i32 = arith.constant 0 : i32
    %c0_i32_0 = arith.constant 0 : i32
    return %arg0, %c0_i32 : i32, i32
  }
}

</mosaic_0001>

<llo_original>
// kernel: tpu_custom_call.1
$region0: #{tpu_custom_call.1}
  #allocation0 [shape = 'u32[]', space=smem, size = 0x4, offset = 0x4, fixed_abs, tag = 'smem constant byte address 0x4 - core index']
  #allocation1 [shape = 'u32[72,128]{1,0:T(1,128)}', space=vmem, size = 0x9000, scoped, tag = 'internal scratch']
  %s0 = inlined_call_operand.vmem [shape: f32[8,32], index: 0, kind: input, shape index: {}]
  %s1 = inlined_call_operand.vmem [shape: s32[8,1], index: 1, kind: input, shape index: {}]
  %s2 = inlined_call_operand.hbm [shape: f32[1,1], index: 2, kind: output, shape index: {}]
  %s3 = sld [smem:[#allocation0]]
  $region18: #{tpu_custom_call.1} parent=0
    _
  %s5 = ssub.s32 1, %s3
  %s6 = scalar_select 0, %s5, %s3
  $region1: #{tpu_custom_call.1} parent=0
    #allocation2 [shape = 'u8[512]{0}', space=smem, size = 0x200, scoped, tag = 'output window, operand 0, single buffered']
    #allocation3 [shape = 's32[1]{0}', space=sflag, size = 0x4, scoped, tag = 'scoped memory for tpu_custom_call.1']
    %7 = vsyncpa [#allocation3], 0
    // Predicated region
    $region2: #{tpu_custom_call.1} parent=1 // pred_check
      _
    $region3: #{tpu_custom_call.1} parent=1 // pred_check_branch
      %9 = sbr.rel (0) target = $region5
    $region4: #{tpu_custom_call.1} parent=1 // pred_region
      _
    $region5: #{tpu_custom_call.1} parent=1 // pred_fallthru
      _
    // Predicated region
    $region6: #{tpu_custom_call.1} parent=1 // pred_check
      _
    $region7: #{tpu_custom_call.1} parent=1 // pred_check_branch
      %11 = sbr.rel (0) target = $region9
    $region8: #{tpu_custom_call.1} parent=1 // pred_region
      _
    $region9: #{tpu_custom_call.1} parent=1 // pred_fallthru
      _
    %v12 = vld [vmem:[%s0] sm:$0xff]
    %v13 = vld [vmem:[%s1] sm:$0xff]
    %vm14 = vcmask 261120
    %v15 = vsel %vm14, %v12, -inf
    %16 = vmax.xlane.f32.xlu0 %v15
    %v17 = vpop.xlane.xlu0 %16
    %v18 = vsub.f32 %v12, %v17
    %v19 = vmul.f32 %v18, 1.442695
    %v20 = vpow.pop %v19
    %v21 = vsel %vm14, %v20, 0.0
    %22 = vadd.xlane.f32.xlu0 %v21
    %v23 = vpop.xlane.xlu0 %22
    %v24 = vlog2.pop %v23
    %v25 = vmul.f32 %v24, 0.6931472
    %v26 = vlaneseq
    %v27 = vand.u32 %v26, 127
    %28 = vset.pattern.permute.xlu0 0
    %29 = vperm.xlu0 %28, %v13
    %v30 = vpop.permute.xlu0 %29
    %vm31 = vcmp.eq.s32.totalorder %v27, %v30
    %v32 = vsel %vm31, %v18, 0.0
    %v33 = vsel %vm14, %v32, 0.0
    %34 = vadd.xlane.f32.xlu0 %v33
    %v35 = vpop.xlane.xlu0 %34
    %v36 = vsub.f32 %v35, %v25
    %v37 = vmul.f32 %v36, 1.442695
    %v38 = vpow.pop %v37
    %v39 = vsub.f32 1.0, %v38
    %v40 = vmax.f32 %v39, 0.0
    %v41 = vmul.f32 %v40, %v40
    %v42 = vmul.f32 %v41, %v36
    %s43 = smul.u32 0, 8
    %v44 = vlaneseq
    %v45 = vshrl.u32 %v44, 7
    %v46 = vstv %s43
    %v47 = vadd.s32 %v46, %v45
    %vm48 = vcmp.lt.s32.totalorder %v47, 8
    %v49 = vsel %vm48, %v42, 0.0
    %vm50 = vcmask 7168
    %v51 = vsel %vm50, %v49, 0.0
    %52 = vadd.xlane.f32.xlu0 %v51
    %v53 = vpop.xlane.xlu0 %52
    %v54 = vrot.slane %v53, 4
    %v55 = vadd.f32 %v53, %v54
    %v56 = vrot.slane %v55, 2
    %v57 = vadd.f32 %v55, %v56
    %v58 = vrot.slane %v57, 1
    %v59 = vadd.f32 %v57, %v58
    %s60 = vtos %v59
    %s61 = scalar_lea.smem [#allocation2], 0
    %62 = sst [smem:[%s61]] %s60
    // Predicated region
    $region10: #{tpu_custom_call.1} parent=1 // pred_check
      _
    $region11: #{tpu_custom_call.1} parent=1 // pred_check_branch
      %64 = sbr.rel (0) target = $region13
    $region12: #{tpu_custom_call.1} parent=1 // pred_region
      %66 = vsyncadd [#allocation3], 0
      %s68 = sshll.u32 %s2, 4
      %s69 = int_to_ptr.hbm [resolvable:$true] %s68
      %71 = dma.smem_to_hbm [#allocation2], 16, %s69, [#allocation3]
    $region13: #{tpu_custom_call.1} parent=1 // pred_fallthru
      _
    // Predicated region
    $region14: #{tpu_custom_call.1} parent=1 // pred_check
      _
    $region15: #{tpu_custom_call.1} parent=1 // pred_check_branch
      %73 = sbr.rel (0) target = $region17
    $region16: #{tpu_custom_call.1} parent=1 // pred_region
      %75 = dma.done [#allocation3], 16
    $region17: #{tpu_custom_call.1} parent=1 // pred_fallthru
      _
    %76 = sfence
    %77 = vsyncpa [#allocation3], 1

</llo_original>
